<compile_context>
chip_gen: v7x
topology: tpu7x:2x2x1
jax: 0.10.0
libtpu: 0.0.40
codegen_flags: <defaults>
</compile_context>

<pallas_src>
import numpy as np
import jax
import jax.numpy as jnp
from jax.experimental import pallas as pl
from jax.experimental.pallas import tpu as pltpu

LANE = 128
_MAX_TB = 1024          # rows per grid step cap (~1.7 MB/step of VMEM)


def _round_up(n, m):
    return (n + m - 1) // m * m


# ---------------------------------------------------------------------------
# GELU (exact-erf form, matching torch.nn.GELU(approximate='none')).
# erf: Abramowitz & Stegun 7.1.25 (3 terms, |err| <= 2.5e-5).  The divide is
# routed to the EUP (approx reciprocal) and refined with one Newton step so
# the deviation from an exact divide is ~1e-6.  Only used inside the kernel.
# ---------------------------------------------------------------------------
_ERF_P = 0.47047
_ERF_A1, _ERF_A2, _ERF_A3 = 0.3480242, -0.0958798, 0.7478556
_SQRT1_2 = 0.7071067811865476


def _recip(v):
    r = pl.reciprocal(v, approx=True)        # EUP slot, off the vector ALU
    return r * (2.0 - v * r)                 # one Newton refinement step


def _erf(x):
    ax = jnp.abs(x)
    t = _recip(1.0 + _ERF_P * ax)
    poly = ((_ERF_A3 * t + _ERF_A2) * t + _ERF_A1) * t
    e = 1.0 - poly * jnp.exp(-ax * ax)       # exp on the EUP slot
    return jnp.where(x < 0.0, -e, e)


def _gelu(x):
    return 0.5 * x * (1.0 + _erf(x * _SQRT1_2))


# ---------------------------------------------------------------------------
# Kernel: one batch tile (TB rows) per grid step; whole network fused.
#   consts rows: 0=timestep_coeff, 1=timestep_phase, 2=bt1, 3=bt2+bi,
#                4=bl1, 5=bo   (lane-padded to L=128, unused lanes zero).
#   w_ref[k] are (L, L) bf16 zero-padded block matrices:
#     W0 = wt1 at [0:C,0:C]   (timestep_embed[0])
#     W1 = wt2 at [0:C,0:C]   (timestep_embed[2])
#     W2 = wl1 at [0:C,0:C]   (hidden layer)
#     W3 = wo  at [0:C,0:D]   (output projection)
#   wx_ref is (D, L) bf16 with wi at [:, 0:C]   (input_embed)
# Because every block is zero outside the live lanes, padding lanes remain
# exactly zero through all stages — no masks or iotas are needed.
# ---------------------------------------------------------------------------
def predictor_kernel(a_ref, x_ref, w_ref, wx_ref, c_ref, out_ref):
    f32, bf16 = jnp.float32, jnp.bfloat16

    tc = c_ref[0:1, :]          # timestep_coeff   (zeros beyond channel C)
    tp = c_ref[1:2, :]          # timestep_phase
    b1 = c_ref[2:3, :]          # timestep_embed[0] bias
    b2 = c_ref[3:4, :]          # timestep_embed[2] bias + input_embed bias
    b3 = c_ref[4:5, :]          # hidden-layer bias
    b4 = c_ref[5:6, :]          # output-projection bias

    a = a_ref[...]                                            # (TB, 1) f32
    # embed_alphas = sin(coeff * alpha + phase); padding lanes give sin(0)=0.
    sin_emb = jnp.sin(tc * a + tp)                            # (TB, L) f32

    # timestep_embed: Linear -> GELU -> Linear  (bf16 in, f32 accumulate)
    h = _gelu(jnp.dot(sin_emb.astype(bf16), w_ref[0],
                      preferred_element_type=f32) + b1)
    emb = (jnp.dot(h.astype(bf16), w_ref[1], preferred_element_type=f32)
           + jnp.dot(x_ref[...].astype(bf16), wx_ref[...],
                     preferred_element_type=f32)              # input_embed
           + b2)                                              # emb_x + emb_a
    h = _gelu(emb)
    # hidden layer (num_layers = 1)
    h = _gelu(jnp.dot(h.astype(bf16), w_ref[2],
                      preferred_element_type=f32) + b3)
    # output projection: lanes [0, D) hold the flattened prediction
    out_ref[...] = jnp.dot(h.astype(bf16), w_ref[3],
                           preferred_element_type=f32) + b4


# ---------------------------------------------------------------------------
# One-time parameter packing (weight-layout prep, done once per model).
# ---------------------------------------------------------------------------
def pack_params(params, data_shape, channels):
    D = int(np.prod(data_shape))
    C = channels
    L = LANE
    # Single-tile packed scheme needs both widths to fit one lane group.
    assert C <= L and D <= L, "packed single-tile path needs C<=128 and D<=128"

    def blk(m, r=0, c=0):
        w = np.zeros((L, L), np.float32)
        m = np.asarray(m, np.float32)
        w[r:r + m.shape[0], c:c + m.shape[1]] = m
        return w

    wstack = np.stack([blk(params['wt1']),    # timestep_embed[0]
                       blk(params['wt2']),    # timestep_embed[2]
                       blk(params['wl1']),    # hidden layer
                       blk(params['wo'])])    # output projection
    wstack = jnp.asarray(wstack, dtype=jnp.bfloat16)

    wx = np.zeros((D, L), np.float32)
    wx[:, :C] = np.asarray(params['wi'], np.float32)          # input_embed
    wx = jnp.asarray(wx, dtype=jnp.bfloat16)

    consts = np.zeros((8, L), np.float32)
    consts[0, :C] = np.asarray(params['tc'])[0]
    consts[1, :C] = np.asarray(params['tp'])[0]
    consts[2, :C] = np.asarray(params['bt1'])[0]
    consts[3, :C] = np.asarray(params['bt2'])[0] + np.asarray(params['bi'])[0]
    consts[4, :C] = np.asarray(params['bl1'])[0]
    consts[5, :D] = np.asarray(params['bo'])[0]

    return dict(wstack=wstack, wx=wx, consts=jnp.asarray(consts),
                D=D, C=C, L=L)


# ---------------------------------------------------------------------------
# Batch-tile selection: amortize the ~0.35 us/step overhead with large tiles
# and, on multi-TensorCore chips (v7x), split mid-size batches so the
# "parallel" grid spans all cores.
# ---------------------------------------------------------------------------
def _num_tensorcores():
    try:
        info = pltpu.get_tpu_info()
        for name in ("num_cores", "tensorcore_count", "num_tensorcores",
                     "core_count"):
            v = getattr(info, name, None)
            if v:
                return int(v)
    except Exception:
        pass
    try:
        return max(1, int(getattr(jax.devices()[0], "num_cores", 1) or 1))
    except Exception:
        return 1


def _pick_batch_tile(B, n_cores):
    if n_cores > 1 and B >= 16:
        tb = _round_up(pl.cdiv(B, n_cores), 8)
    else:
        tb = _round_up(B, 8)
    return min(tb, _MAX_TB)


def predictor_forward(inputs, alphas, packed):
    """Pallas forward pass.  inputs: (B, *data_shape), alphas: (B,)."""
    B = inputs.shape[0]
    D, C, L = packed['D'], packed['C'], packed['L']
    assert int(np.prod(inputs.shape[1:])) == D

    x = inputs.reshape(B, D).astype(jnp.float32)     # free reshape, no slab
    a = alphas.astype(jnp.float32).reshape(B, 1)

    n_cores = _num_tensorcores()
    TB = _pick_batch_tile(B, n_cores)
    B_pad = _round_up(B, TB)
    if B_pad != B:
        x = jnp.pad(x, ((0, B_pad - B), (0, 0)))
        a = jnp.pad(a, ((0, B_pad - B), (0, 0)))

    # Advisory cost so XLA can overlap this tiny call with neighbouring ops.
    flops = int(2 * B_pad * (4 * L * L + D * L))
    transcendentals = int(B_pad * (C + 6 * L))        # sin + 3x(exp + recip)
    bytes_accessed = int(x.size * 4 + a.size * 4
                         + packed['wstack'].size * 2 + packed['wx'].size * 2
                         + packed['consts'].size * 4 + B_pad * L * 4)

    out = pl.pallas_call(
        predictor_kernel,
        out_shape=jax.ShapeDtypeStruct((B_pad, L), jnp.float32),
        grid=(B_pad // TB,),
        in_specs=[
            pl.BlockSpec((TB, 1), lambda i: (i, 0)),         # alphas
            pl.BlockSpec((TB, D), lambda i: (i, 0)),         # flat inputs
            pl.BlockSpec((4, L, L), lambda i: (0, 0, 0)),    # packed weights
            pl.BlockSpec((D, L), lambda i: (0, 0)),          # input_embed W
            pl.BlockSpec((8, L), lambda i: (0, 0)),          # coeff/phase/biases
        ],
        out_specs=pl.BlockSpec((TB, L), lambda i: (i, 0)),   # lane-dense store
        compiler_params=pltpu.CompilerParams(
            dimension_semantics=("parallel",)),
        cost_estimate=pl.CostEstimate(flops=flops,
                                      transcendentals=transcendentals,
                                      bytes_accessed=bytes_accessed),
    )(a, x, packed['wstack'], packed['wx'], packed['consts'])

    return out[:B, :D].reshape(inputs.shape)


# ---------------------------------------------------------------------------
# Plain-JAX reference mirroring the module: exact-erf GELU, bf16 matmul
# inputs with f32 accumulation (same matmul precision as the kernel).
# ---------------------------------------------------------------------------
def predictor_reference(inputs, alphas, params):
    f32, bf16 = jnp.float32, jnp.bfloat16
    B = inputs.shape[0]
    x = inputs.reshape(B, -1).astype(f32)
    a = alphas.astype(f32)[:, None]
    dot = lambda u, w: jnp.dot(u.astype(bf16), w.astype(bf16),
                               preferred_element_type=f32)
    gelu = lambda v: jax.nn.gelu(v, approximate=False)
    emb_a = jnp.sin(params['tc'] * a + params['tp'])
    h = gelu(dot(emb_a, params['wt1']) + params['bt1'])
    emb_a = dot(h, params['wt2']) + params['bt2']
    emb_x = dot(x, params['wi']) + params['bi']
    h = gelu(emb_x + emb_a)
    h = gelu(dot(h, params['wl1']) + params['bl1'])
    out = dot(h, params['wo']) + params['bo']
    return out.reshape(inputs.shape)


def make_params(key, data_shape, channels):
    """Deterministic synthetic parameters (shapes match Predictor.__init__)."""
    D = int(np.prod(data_shape))
    C = channels
    ks = jax.random.split(key, 8)

    def linear(k, fan_in, fan_out):
        kw, kb = jax.random.split(k)
        lim = 1.0 / np.sqrt(fan_in)
        w = jax.random.uniform(kw, (fan_in, fan_out), jnp.float32, -lim, lim)
        b = jax.random.uniform(kb, (1, fan_out), jnp.float32, -lim, lim)
        return w, b

    params = {}
    params['tc'] = jnp.linspace(0.1, 100.0, C, dtype=jnp.float32)[None, :]
    params['tp'] = jax.random.normal(ks[0], (1, C), jnp.float32)
    params['wi'], params['bi'] = linear(ks[1], D, C)        # input_embed
    params['wt1'], params['bt1'] = linear(ks[2], C, C)      # timestep_embed[0]
    params['wt2'], params['bt2'] = linear(ks[3], C, C)      # timestep_embed[2]
    params['wl1'], params['bl1'] = linear(ks[4], C, C)      # layers (1 hidden)
    params['wo'], params['bo'] = linear(ks[5], C, D)        # output projection
    return params


if __name__ == "__main__":
    key = jax.random.PRNGKey(0)
    data_shape = (4, 16)   # D = 64
    channels = 32
    batch = 8

    kp, kx, ka = jax.random.split(key, 3)
    params = make_params(kp, data_shape, channels)
    packed = pack_params(params, data_shape, channels)   # one-time weight prep

    inputs = jax.random.normal(kx, (batch,) + data_shape, jnp.float32)
    alphas = jax.random.uniform(ka, (batch,), jnp.float32)

    out = jax.block_until_ready(predictor_forward(inputs, alphas, packed))
    assert out.shape == inputs.shape and out.dtype == jnp.float32

    ref = jax.block_until_ready(predictor_reference(inputs, alphas, params))
    # Tolerance covers bf16 matmul rounding plus the ~2.5e-5 erf approximation
    # and ~1e-6 EUP-reciprocal refinement error inside the kernel's GELU.
    np.testing.assert_allclose(np.asarray(out), np.asarray(ref),
                               rtol=5e-3, atol=5e-3)

    print("KERNEL_OK")
</pallas_src>

<mosaic_0001>
module attributes {stable_mosaic.version = 11 : i64} {
  func.func @predictor_kernel(%arg0: i32, %arg1: memref<8x1xf32, #tpu.memory_space<vmem>>, %arg2: memref<8x64xf32, #tpu.memory_space<vmem>>, %arg3: memref<4x128x128xbf16, #tpu.memory_space<vmem>>, %arg4: memref<64x128xbf16, #tpu.memory_space<vmem>>, %arg5: memref<8x128xf32, #tpu.memory_space<vmem>>, %arg6: memref<8x128xf32, #tpu.memory_space<vmem>>) attributes {dimension_semantics = [#tpu.dimension_semantics<parallel>], iteration_bounds = array<i64: 1>, scalar_prefetch = 0 : i64, scratch_operands = 0 : i64, tpu.core_type = #tpu.core_type<tc>, window_params = [{transform_indices = @transform_0, window_bounds = array<i64: 8, 1>}, {transform_indices = @transform_1, window_bounds = array<i64: 8, 64>}, {pipeline_mode = #tpu.pipeline_mode<synchronous>, transform_indices = @transform_2, window_bounds = array<i64: 4, 128, 128>}, {pipeline_mode = #tpu.pipeline_mode<synchronous>, transform_indices = @transform_3, window_bounds = array<i64: 64, 128>}, {pipeline_mode = #tpu.pipeline_mode<synchronous>, transform_indices = @transform_4, window_bounds = array<i64: 8, 128>}, {transform_indices = @transform_5, window_bounds = array<i64: 8, 128>}]} {
    %c0 = arith.constant 0 : index
    %c0_0 = arith.constant 0 : index
    %0 = vector.load %arg5[%c0, %c0_0] : memref<8x128xf32, #tpu.memory_space<vmem>>, vector<1x128xf32>
    %c1 = arith.constant 1 : index
    %c0_1 = arith.constant 0 : index
    %1 = vector.load %arg5[%c1, %c0_1] : memref<8x128xf32, #tpu.memory_space<vmem>>, vector<1x128xf32>
    %c2 = arith.constant 2 : index
    %c0_2 = arith.constant 0 : index
    %2 = vector.load %arg5[%c2, %c0_2] : memref<8x128xf32, #tpu.memory_space<vmem>>, vector<1x128xf32>
    %c3 = arith.constant 3 : index
    %c0_3 = arith.constant 0 : index
    %3 = vector.load %arg5[%c3, %c0_3] : memref<8x128xf32, #tpu.memory_space<vmem>>, vector<1x128xf32>
    %c4 = arith.constant 4 : index
    %c0_4 = arith.constant 0 : index
    %4 = vector.load %arg5[%c4, %c0_4] : memref<8x128xf32, #tpu.memory_space<vmem>>, vector<1x128xf32>
    %c5 = arith.constant 5 : index
    %c0_5 = arith.constant 0 : index
    %5 = vector.load %arg5[%c5, %c0_5] : memref<8x128xf32, #tpu.memory_space<vmem>>, vector<1x128xf32>
    %c0_6 = arith.constant 0 : index
    %c0_7 = arith.constant 0 : index
    %6 = vector.load %arg1[%c0_6, %c0_7] : memref<8x1xf32, #tpu.memory_space<vmem>>, vector<8x1xf32>
    %7 = vector.broadcast %0 : vector<1x128xf32> to vector<8x128xf32>
    %8 = vector.broadcast %6 : vector<8x1xf32> to vector<8x128xf32>
    %9 = arith.mulf %7, %8 : vector<8x128xf32>
    %10 = vector.broadcast %1 : vector<1x128xf32> to vector<8x128xf32>
    %11 = arith.addf %9, %10 : vector<8x128xf32>
    %12 = math.sin %11 : vector<8x128xf32>
    %13 = arith.truncf %12 : vector<8x128xf32> to vector<8x128xbf16>
    %c0_8 = arith.constant 0 : index
    %c0_9 = arith.constant 0 : index
    %c0_10 = arith.constant 0 : index
    %14 = vector.load %arg3[%c0_8, %c0_9, %c0_10] : memref<4x128x128xbf16, #tpu.memory_space<vmem>>, vector<1x128x128xbf16>
    %15 = vector.shape_cast %14 : vector<1x128x128xbf16> to vector<128x128xbf16>
    %cst = arith.constant dense<0.000000e+00> : vector<8x128xf32>
    %16 = tpu.matmul %13, %15, %cst {dimension_numbers = #tpu.dot_dimension_numbers<[1], [0], [0], [1], [0, 0, 1, 1], [], []>} : vector<8x128xbf16>, vector<128x128xbf16>, vector<8x128xf32> -> vector<8x128xf32>
    %17 = vector.broadcast %2 : vector<1x128xf32> to vector<8x128xf32>
    %18 = arith.addf %16, %17 : vector<8x128xf32>
    %cst_11 = arith.constant 5.000000e-01 : f32
    %19 = vector.broadcast %cst_11 : f32 to vector<8x128xf32>
    %20 = arith.mulf %19, %18 : vector<8x128xf32>
    %cst_12 = arith.constant 0.707106769 : f32
    %21 = vector.broadcast %cst_12 : f32 to vector<8x128xf32>
    %22 = arith.mulf %18, %21 : vector<8x128xf32>
    %23 = math.absf %22 : vector<8x128xf32>
    %cst_13 = arith.constant 4.704700e-01 : f32
    %24 = vector.broadcast %cst_13 : f32 to vector<8x128xf32>
    %25 = arith.mulf %24, %23 : vector<8x128xf32>
    %cst_14 = arith.constant 1.000000e+00 : f32
    %26 = vector.broadcast %cst_14 : f32 to vector<8x128xf32>
    %27 = arith.addf %26, %25 : vector<8x128xf32>
    %28 = tpu.reciprocal %27 {approx = true} : vector<8x128xf32> -> vector<8x128xf32>
    %29 = arith.mulf %27, %28 : vector<8x128xf32>
    %cst_15 = arith.constant 2.000000e+00 : f32
    %30 = vector.broadcast %cst_15 : f32 to vector<8x128xf32>
    %31 = arith.subf %30, %29 : vector<8x128xf32>
    %32 = arith.mulf %28, %31 : vector<8x128xf32>
    %cst_16 = arith.constant 0.747855603 : f32
    %33 = vector.broadcast %cst_16 : f32 to vector<8x128xf32>
    %34 = arith.mulf %33, %32 : vector<8x128xf32>
    %cst_17 = arith.constant -9.587980e-02 : f32
    %35 = vector.broadcast %cst_17 : f32 to vector<8x128xf32>
    %36 = arith.addf %34, %35 : vector<8x128xf32>
    %37 = arith.mulf %36, %32 : vector<8x128xf32>
    %cst_18 = arith.constant 0.348024189 : f32
    %38 = vector.broadcast %cst_18 : f32 to vector<8x128xf32>
    %39 = arith.addf %37, %38 : vector<8x128xf32>
    %40 = arith.mulf %39, %32 : vector<8x128xf32>
    %cst_19 = arith.constant 0.000000e+00 : f32
    %41 = vector.broadcast %cst_19 : f32 to vector<8x128xf32>
    %42 = arith.subf %41, %23 : vector<8x128xf32>
    %43 = arith.mulf %42, %23 : vector<8x128xf32>
    %44 = math.exp %43 : vector<8x128xf32>
    %45 = arith.mulf %40, %44 : vector<8x128xf32>
    %cst_20 = arith.constant 1.000000e+00 : f32
    %46 = vector.broadcast %cst_20 : f32 to vector<8x128xf32>
    %47 = arith.subf %46, %45 : vector<8x128xf32>
    %cst_21 = arith.constant 0.000000e+00 : f32
    %48 = vector.broadcast %cst_21 : f32 to vector<8x128xf32>
    %49 = arith.cmpf olt, %22, %48 : vector<8x128xf32>
    %cst_22 = arith.constant 0.000000e+00 : f32
    %50 = vector.broadcast %cst_22 : f32 to vector<8x128xf32>
    %51 = arith.subf %50, %47 : vector<8x128xf32>
    %52 = arith.select %49, %51, %47 : vector<8x128xi1>, vector<8x128xf32>
    %cst_23 = arith.constant 1.000000e+00 : f32
    %53 = vector.broadcast %cst_23 : f32 to vector<8x128xf32>
    %54 = arith.addf %53, %52 : vector<8x128xf32>
    %55 = arith.mulf %20, %54 : vector<8x128xf32>
    %56 = arith.truncf %55 : vector<8x128xf32> to vector<8x128xbf16>
    %c1_24 = arith.constant 1 : index
    %c0_25 = arith.constant 0 : index
    %c0_26 = arith.constant 0 : index
    %57 = vector.load %arg3[%c1_24, %c0_25, %c0_26] : memref<4x128x128xbf16, #tpu.memory_space<vmem>>, vector<1x128x128xbf16>
    %58 = vector.shape_cast %57 : vector<1x128x128xbf16> to vector<128x128xbf16>
    %cst_27 = arith.constant dense<0.000000e+00> : vector<8x128xf32>
    %59 = tpu.matmul %56, %58, %cst_27 {dimension_numbers = #tpu.dot_dimension_numbers<[1], [0], [0], [1], [0, 0, 1, 1], [], []>} : vector<8x128xbf16>, vector<128x128xbf16>, vector<8x128xf32> -> vector<8x128xf32>
    %c0_28 = arith.constant 0 : index
    %c0_29 = arith.constant 0 : index
    %60 = vector.load %arg2[%c0_28, %c0_29] : memref<8x64xf32, #tpu.memory_space<vmem>>, vector<8x64xf32>
    %61 = arith.truncf %60 : vector<8x64xf32> to vector<8x64xbf16>
    %c0_30 = arith.constant 0 : index
    %c0_31 = arith.constant 0 : index
    %62 = vector.load %arg4[%c0_30, %c0_31] : memref<64x128xbf16, #tpu.memory_space<vmem>>, vector<64x128xbf16>
    %cst_32 = arith.constant dense<0.000000e+00> : vector<8x128xf32>
    %63 = tpu.matmul %61, %62, %cst_32 {dimension_numbers = #tpu.dot_dimension_numbers<[1], [0], [0], [1], [0, 0, 1, 1], [], []>} : vector<8x64xbf16>, vector<64x128xbf16>, vector<8x128xf32> -> vector<8x128xf32>
    %64 = arith.addf %59, %63 : vector<8x128xf32>
    %65 = vector.broadcast %3 : vector<1x128xf32> to vector<8x128xf32>
    %66 = arith.addf %64, %65 : vector<8x128xf32>
    %cst_33 = arith.constant 5.000000e-01 : f32
    %67 = vector.broadcast %cst_33 : f32 to vector<8x128xf32>
    %68 = arith.mulf %67, %66 : vector<8x128xf32>
    %cst_34 = arith.constant 0.707106769 : f32
    %69 = vector.broadcast %cst_34 : f32 to vector<8x128xf32>
    %70 = arith.mulf %66, %69 : vector<8x128xf32>
    %71 = math.absf %70 : vector<8x128xf32>
    %cst_35 = arith.constant 4.704700e-01 : f32
    %72 = vector.broadcast %cst_35 : f32 to vector<8x128xf32>
    %73 = arith.mulf %72, %71 : vector<8x128xf32>
    %cst_36 = arith.constant 1.000000e+00 : f32
    %74 = vector.broadcast %cst_36 : f32 to vector<8x128xf32>
    %75 = arith.addf %74, %73 : vector<8x128xf32>
    %76 = tpu.reciprocal %75 {approx = true} : vector<8x128xf32> -> vector<8x128xf32>
    %77 = arith.mulf %75, %76 : vector<8x128xf32>
    %cst_37 = arith.constant 2.000000e+00 : f32
    %78 = vector.broadcast %cst_37 : f32 to vector<8x128xf32>
    %79 = arith.subf %78, %77 : vector<8x128xf32>
    %80 = arith.mulf %76, %79 : vector<8x128xf32>
    %cst_38 = arith.constant 0.747855603 : f32
    %81 = vector.broadcast %cst_38 : f32 to vector<8x128xf32>
    %82 = arith.mulf %81, %80 : vector<8x128xf32>
    %cst_39 = arith.constant -9.587980e-02 : f32
    %83 = vector.broadcast %cst_39 : f32 to vector<8x128xf32>
    %84 = arith.addf %82, %83 : vector<8x128xf32>
    %85 = arith.mulf %84, %80 : vector<8x128xf32>
    %cst_40 = arith.constant 0.348024189 : f32
    %86 = vector.broadcast %cst_40 : f32 to vector<8x128xf32>
    %87 = arith.addf %85, %86 : vector<8x128xf32>
    %88 = arith.mulf %87, %80 : vector<8x128xf32>
    %cst_41 = arith.constant 0.000000e+00 : f32
    %89 = vector.broadcast %cst_41 : f32 to vector<8x128xf32>
    %90 = arith.subf %89, %71 : vector<8x128xf32>
    %91 = arith.mulf %90, %71 : vector<8x128xf32>
    %92 = math.exp %91 : vector<8x128xf32>
    %93 = arith.mulf %88, %92 : vector<8x128xf32>
    %cst_42 = arith.constant 1.000000e+00 : f32
    %94 = vector.broadcast %cst_42 : f32 to vector<8x128xf32>
    %95 = arith.subf %94, %93 : vector<8x128xf32>
    %cst_43 = arith.constant 0.000000e+00 : f32
    %96 = vector.broadcast %cst_43 : f32 to vector<8x128xf32>
    %97 = arith.cmpf olt, %70, %96 : vector<8x128xf32>
    %cst_44 = arith.constant 0.000000e+00 : f32
    %98 = vector.broadcast %cst_44 : f32 to vector<8x128xf32>
    %99 = arith.subf %98, %95 : vector<8x128xf32>
    %100 = arith.select %97, %99, %95 : vector<8x128xi1>, vector<8x128xf32>
    %cst_45 = arith.constant 1.000000e+00 : f32
    %101 = vector.broadcast %cst_45 : f32 to vector<8x128xf32>
    %102 = arith.addf %101, %100 : vector<8x128xf32>
    %103 = arith.mulf %68, %102 : vector<8x128xf32>
    %104 = arith.truncf %103 : vector<8x128xf32> to vector<8x128xbf16>
    %c2_46 = arith.constant 2 : index
    %c0_47 = arith.constant 0 : index
    %c0_48 = arith.constant 0 : index
    %105 = vector.load %arg3[%c2_46, %c0_47, %c0_48] : memref<4x128x128xbf16, #tpu.memory_space<vmem>>, vector<1x128x128xbf16>
    %106 = vector.shape_cast %105 : vector<1x128x128xbf16> to vector<128x128xbf16>
    %cst_49 = arith.constant dense<0.000000e+00> : vector<8x128xf32>
    %107 = tpu.matmul %104, %106, %cst_49 {dimension_numbers = #tpu.dot_dimension_numbers<[1], [0], [0], [1], [0, 0, 1, 1], [], []>} : vector<8x128xbf16>, vector<128x128xbf16>, vector<8x128xf32> -> vector<8x128xf32>
    %108 = vector.broadcast %4 : vector<1x128xf32> to vector<8x128xf32>
    %109 = arith.addf %107, %108 : vector<8x128xf32>
    %cst_50 = arith.constant 5.000000e-01 : f32
    %110 = vector.broadcast %cst_50 : f32 to vector<8x128xf32>
    %111 = arith.mulf %110, %109 : vector<8x128xf32>
    %cst_51 = arith.constant 0.707106769 : f32
    %112 = vector.broadcast %cst_51 : f32 to vector<8x128xf32>
    %113 = arith.mulf %109, %112 : vector<8x128xf32>
    %114 = math.absf %113 : vector<8x128xf32>
    %cst_52 = arith.constant 4.704700e-01 : f32
    %115 = vector.broadcast %cst_52 : f32 to vector<8x128xf32>
    %116 = arith.mulf %115, %114 : vector<8x128xf32>
    %cst_53 = arith.constant 1.000000e+00 : f32
    %117 = vector.broadcast %cst_53 : f32 to vector<8x128xf32>
    %118 = arith.addf %117, %116 : vector<8x128xf32>
    %119 = tpu.reciprocal %118 {approx = true} : vector<8x128xf32> -> vector<8x128xf32>
    %120 = arith.mulf %118, %119 : vector<8x128xf32>
    %cst_54 = arith.constant 2.000000e+00 : f32
    %121 = vector.broadcast %cst_54 : f32 to vector<8x128xf32>
    %122 = arith.subf %121, %120 : vector<8x128xf32>
    %123 = arith.mulf %119, %122 : vector<8x128xf32>
    %cst_55 = arith.constant 0.747855603 : f32
    %124 = vector.broadcast %cst_55 : f32 to vector<8x128xf32>
    %125 = arith.mulf %124, %123 : vector<8x128xf32>
    %cst_56 = arith.constant -9.587980e-02 : f32
    %126 = vector.broadcast %cst_56 : f32 to vector<8x128xf32>
    %127 = arith.addf %125, %126 : vector<8x128xf32>
    %128 = arith.mulf %127, %123 : vector<8x128xf32>
    %cst_57 = arith.constant 0.348024189 : f32
    %129 = vector.broadcast %cst_57 : f32 to vector<8x128xf32>
    %130 = arith.addf %128, %129 : vector<8x128xf32>
    %131 = arith.mulf %130, %123 : vector<8x128xf32>
    %cst_58 = arith.constant 0.000000e+00 : f32
    %132 = vector.broadcast %cst_58 : f32 to vector<8x128xf32>
    %133 = arith.subf %132, %114 : vector<8x128xf32>
    %134 = arith.mulf %133, %114 : vector<8x128xf32>
    %135 = math.exp %134 : vector<8x128xf32>
    %136 = arith.mulf %131, %135 : vector<8x128xf32>
    %cst_59 = arith.constant 1.000000e+00 : f32
    %137 = vector.broadcast %cst_59 : f32 to vector<8x128xf32>
    %138 = arith.subf %137, %136 : vector<8x128xf32>
    %cst_60 = arith.constant 0.000000e+00 : f32
    %139 = vector.broadcast %cst_60 : f32 to vector<8x128xf32>
    %140 = arith.cmpf olt, %113, %139 : vector<8x128xf32>
    %cst_61 = arith.constant 0.000000e+00 : f32
    %141 = vector.broadcast %cst_61 : f32 to vector<8x128xf32>
    %142 = arith.subf %141, %138 : vector<8x128xf32>
    %143 = arith.select %140, %142, %138 : vector<8x128xi1>, vector<8x128xf32>
    %cst_62 = arith.constant 1.000000e+00 : f32
    %144 = vector.broadcast %cst_62 : f32 to vector<8x128xf32>
    %145 = arith.addf %144, %143 : vector<8x128xf32>
    %146 = arith.mulf %111, %145 : vector<8x128xf32>
    %147 = arith.truncf %146 : vector<8x128xf32> to vector<8x128xbf16>
    %c3_63 = arith.constant 3 : index
    %c0_64 = arith.constant 0 : index
    %c0_65 = arith.constant 0 : index
    %148 = vector.load %arg3[%c3_63, %c0_64, %c0_65] : memref<4x128x128xbf16, #tpu.memory_space<vmem>>, vector<1x128x128xbf16>
    %149 = vector.shape_cast %148 : vector<1x128x128xbf16> to vector<128x128xbf16>
    %cst_66 = arith.constant dense<0.000000e+00> : vector<8x128xf32>
    %150 = tpu.matmul %147, %149, %cst_66 {dimension_numbers = #tpu.dot_dimension_numbers<[1], [0], [0], [1], [0, 0, 1, 1], [], []>} : vector<8x128xbf16>, vector<128x128xbf16>, vector<8x128xf32> -> vector<8x128xf32>
    %151 = vector.broadcast %5 : vector<1x128xf32> to vector<8x128xf32>
    %152 = arith.addf %150, %151 : vector<8x128xf32>
    %c0_67 = arith.constant 0 : index
    %c0_68 = arith.constant 0 : index
    %153 = vector.load %arg6[%c0_67, %c0_68] : memref<8x128xf32, #tpu.memory_space<vmem>>, vector<8x128xf32>
    tpu.vector_store %arg6[%c0_67, %c0_68], %152 {strides = array<i32>} : memref<8x128xf32, #tpu.memory_space<vmem>>, vector<8x128xf32>,
    return
  }
  func.func @transform_0(%arg0: i32) -> (i32, i32) {
    %c0_i32 = arith.constant 0 : i32
    %c0_i32_0 = arith.constant 0 : i32
    return %arg0, %c0_i32 : i32, i32
  }
  func.func @transform_1(%arg0: i32) -> (i32, i32) {
    %c0_i32 = arith.constant 0 : i32
    %c0_i32_0 = arith.constant 0 : i32
    return %arg0, %c0_i32 : i32, i32
  }
  func.func @transform_2(%arg0: i32) -> (i32, i32, i32) {
    %c0_i32 = arith.constant 0 : i32
    %c0_i32_0 = arith.constant 0 : i32
    %c0_i32_1 = arith.constant 0 : i32
    %c0_i32_2 = arith.constant 0 : i32
    return %c0_i32, %c0_i32_0, %c0_i32_1 : i32, i32, i32
  }
  func.func @transform_3(%arg0: i32) -> (i32, i32) {
    %c0_i32 = arith.constant 0 : i32
    %c0_i32_0 = arith.constant 0 : i32
    %c0_i32_1 = arith.constant 0 : i32
    return %c0_i32, %c0_i32_0 : i32, i32
  }
  func.func @transform_4(%arg0: i32) -> (i32, i32) {
    %c0_i32 = arith.constant 0 : i32
    %c0_i32_0 = arith.constant 0 : i32
    %c0_i32_1 = arith.constant 0 : i32
    return %c0_i32, %c0_i32_0 : i32, i32
  }
  func.func @transform_5(%arg0: i32) -> (i32, i32) {
    %c0_i32 = arith.constant 0 : i32
    %c0_i32_0 = arith.constant 0 : i32
    return %arg0, %c0_i32 : i32, i32
  }
}

</mosaic_0001>

<llo_original>
// kernel: tpu_custom_call.1
$region0: #{tpu_custom_call.1}
  #allocation0 [shape = 'u32[]', space=smem, size = 0x4, offset = 0x4, fixed_abs, tag = 'smem constant byte address 0x4 - core index']
  #allocation1 [shape = 'u32[144,128]{1,0:T(1,128)}', space=vmem, size = 0x12000, scoped, tag = 'internal scratch']
  %s0 = inlined_call_operand.vmem [shape: f32[8,1], index: 0, kind: input, shape index: {}]
  %s1 = inlined_call_operand.vmem [shape: f32[8,64], index: 1, kind: input, shape index: {}]
  %s2 = inlined_call_operand.hbm [shape: bf16[4,128,128], index: 2, kind: input, shape index: {}]
  %s3 = inlined_call_operand.hbm [shape: bf16[64,128], index: 3, kind: input, shape index: {}]
  %s4 = inlined_call_operand.vmem [shape: f32[8,128], index: 4, kind: input, shape index: {}]
  %s5 = inlined_call_operand.hbm [shape: f32[8,128], index: 5, kind: output, shape index: {}]
  %s6 = sld [smem:[#allocation0]]
  $region38: #{tpu_custom_call.1} parent=0
    _
  %s8 = ssub.s32 1, %s6
  %s9 = scalar_select 0, %s8, %s6
  $region1: #{tpu_custom_call.1} parent=0
    #allocation2 [shape = 'u8[131072]{0}', space=vmem, size = 0x20000, scoped, tag = 'input window, operand 2, single buffered']
    #allocation3 [shape = 's32[1]{0}', space=sflag, size = 0x4, scoped, tag = 'scoped memory for tpu_custom_call.1']
    #allocation4 [shape = 's32[1]{0}', space=sflag, size = 0x4, scoped, tag = 'scoped memory for tpu_custom_call.1']
    #allocation5 [shape = 'u8[16384]{0}', space=vmem, size = 0x4000, scoped, tag = 'input window, operand 3, single buffered']
    #allocation6 [shape = 's32[1]{0}', space=sflag, size = 0x4, scoped, tag = 'scoped memory for tpu_custom_call.1']
    #allocation7 [shape = 'u8[4096]{0}', space=vmem, size = 0x1000, scoped, tag = 'output window, operand 0, single buffered']
    %10 = vsyncpa [#allocation3], 0
    %11 = vsyncpa [#allocation6], 0
    %12 = vsyncpa [#allocation4], 0
    // Predicated region
    $region2: #{tpu_custom_call.1} parent=1 // pred_check
      _
    $region3: #{tpu_custom_call.1} parent=1 // pred_check_branch
      %14 = sbr.rel (0) target = $region5
    $region4: #{tpu_custom_call.1} parent=1 // pred_region
      _
    $region5: #{tpu_custom_call.1} parent=1 // pred_fallthru
      _
    // Predicated region
    $region6: #{tpu_custom_call.1} parent=1 // pred_check
      _
    $region7: #{tpu_custom_call.1} parent=1 // pred_check_branch
      %16 = sbr.rel (0) target = $region9
    $region8: #{tpu_custom_call.1} parent=1 // pred_region
      _
    $region9: #{tpu_custom_call.1} parent=1 // pred_fallthru
      _
    // Predicated region
    $region10: #{tpu_custom_call.1} parent=1 // pred_check
      _
    $region11: #{tpu_custom_call.1} parent=1 // pred_check_branch
      %18 = sbr.rel (0) target = $region13
    $region12: #{tpu_custom_call.1} parent=1 // pred_region
      %s20 = ssub.s32 4096, 4096
      %21 = vsyncadd [#allocation3], %s20
      %s22 = sshll.u32 [#allocation2], 4
      %s23 = int_to_ptr.vmem [resolvable:$true] %s22
      %28 = dma.hbm_to_vmem [thread:$0]  %s2, 4096, %s23, [#allocation3], 64, 64, 4
    $region13: #{tpu_custom_call.1} parent=1 // pred_fallthru
      _
    // Predicated region
    $region14: #{tpu_custom_call.1} parent=1 // pred_check
      _
    $region15: #{tpu_custom_call.1} parent=1 // pred_check_branch
      %30 = sbr.rel (0) target = $region17
    $region16: #{tpu_custom_call.1} parent=1 // pred_region
      %s32 = ssub.s32 512, 512
      %33 = vsyncadd [#allocation6], %s32
      %s34 = sshll.u32 [#allocation5], 4
      %s35 = int_to_ptr.vmem [resolvable:$true] %s34
      %40 = dma.hbm_to_vmem [thread:$0]  %s3, 512, %s35, [#allocation6], 64, 64, 4
    $region17: #{tpu_custom_call.1} parent=1 // pred_fallthru
      _
    // Predicated region
    $region18: #{tpu_custom_call.1} parent=1 // pred_check
      _
    $region19: #{tpu_custom_call.1} parent=1 // pred_check_branch
      %42 = sbr.rel (0) target = $region21
    $region20: #{tpu_custom_call.1} parent=1 // pred_region
      _
    $region21: #{tpu_custom_call.1} parent=1 // pred_fallthru
      _
    // Predicated region
    $region22: #{tpu_custom_call.1} parent=1 // pred_check
      _
    $region23: #{tpu_custom_call.1} parent=1 // pred_check_branch
      %44 = sbr.rel (0) target = $region25
    $region24: #{tpu_custom_call.1} parent=1 // pred_region
      %45 = dma.done [#allocation3], 4096
    $region25: #{tpu_custom_call.1} parent=1 // pred_fallthru
      _
    // Predicated region
    $region26: #{tpu_custom_call.1} parent=1 // pred_check
      _
    $region27: #{tpu_custom_call.1} parent=1 // pred_check_branch
      %47 = sbr.rel (0) target = $region29
    $region28: #{tpu_custom_call.1} parent=1 // pred_region
      %48 = dma.done [#allocation6], 512
    $region29: #{tpu_custom_call.1} parent=1 // pred_fallthru
      _
    %v50 = vld [vmem:[%s4] sm:$0x1]
    %v51 = vld [vmem:[%s4 + $0x1] sm:$0x1]
    %v52 = vld [vmem:[%s4 + $0x2] sm:$0x1]
    %v53 = vld [vmem:[%s4 + $0x3] sm:$0x1]
    %v54 = vld [vmem:[%s4 + $0x4] sm:$0x1]
    %v55 = vld [vmem:[%s4 + $0x5] sm:$0x1]
    %v56 = vld [vmem:[%s0] sm:$0xff]
    %v57 = vlaneseq
    %v58 = vshrl.u32 %v57, 7
    %v59 = vsub.s32 0, %v58
    %v60 = vrot.slane %v50, %v59
    %62 = vset.pattern.permute.xlu0 0
    %63 = vperm.xlu0 %62, %v56
    %v64 = vpop.permute.xlu0 %63
    %v66 = vmul.f32 %v60, %v64
    %v67 = vlaneseq
    %v68 = vshrl.u32 %v67, 7
    %v69 = vsub.s32 0, %v68
    %v70 = vrot.slane %v51, %v69
    %v71 = vadd.f32 %v66, %v70
    %v72 = vand.u32 2147483647, %v71
    %vm73 = vcmp.le.f32.partialorder %v72, 0.7853982
    %vm74 = vcmp.lt.s32.totalorder %v71, 0
    %v75 = vand.u32 %v71, 2139095040
    %v76 = vshrl.u32 %v75, 23
    %v77 = vsub.s32 %v76, 127
    %v78 = vand.u32 2147483647, %v71
    %v79 = vand.u32 %v78, 8388607
    %v80 = vor.u32 %v79, 8388608
    %v81 = vsub.s32 0, %v80
    %v82 = vadd.s32 %v77, 1
    %vm83 = vcmp.gt.s32.totalorder %v82, 0
    %v84 = vsel %vm83, %v82, 0
    %v85 = vshrl.u32 %v84, 5
    %v86 = vand.u32 %v84, 31
    %v87 = vsub.s32 32, %v86
    %v88 = vshrl.u32 683565275, %v87
    %v89 = vshll.u32 683565275, %v86
    %v90 = vshrl.u32 2475754826, %v87
    %v91 = vor.u32 %v89, %v90
    %v92 = vshll.u32 2475754826, %v86
    %v93 = vshrl.u32 2131351028, %v87
    %v94 = vor.u32 %v92, %v93
    %v95 = vshll.u32 2131351028, %v86
    %v96 = vshrl.u32 2102212464, %v87
    %v97 = vor.u32 %v95, %v96
    %v98 = vshll.u32 2102212464, %v86
    %v99 = vshrl.u32 920167782, %v87
    %v100 = vor.u32 %v98, %v99
    %v101 = vshll.u32 920167782, %v86
    %v102 = vshrl.u32 1326507024, %v87
    %v103 = vor.u32 %v101, %v102
    %vm104 = vcmp.lt.s32.totalorder %v85, 1
    %vm105 = vcmp.lt.s32.totalorder %v85, 2
    %vm106 = vcmp.lt.s32.totalorder %v85, 3
    %vm107 = vcmp.lt.s32.totalorder %v85, 4
    %v108 = vsel %vm104, %v88, %v91
    %v109 = vsel %vm107, %v97, 2102212464
    %v110 = vsel %vm106, %v94, %v109
    %v111 = vsel %vm105, %v108, %v110
    %v112 = vsel %vm104, %v91, %v94
    %v113 = vsel %vm107, %v100, 920167782
    %v114 = vsel %vm106, %v97, %v113
    %v115 = vsel %vm105, %v112, %v114
    %v116 = vsel %vm104, %v94, %v97
    %v117 = vsel %vm107, %v103, 1326507024
    %v118 = vsel %vm106, %v100, %v117
    %v119 = vsel %vm105, %v116, %v118
    %v120 = vshll.u32 %v80, 8
    %v121 = vmul.u32.u64.compose %v120, %v119
    %v122 = vextract.low.u32 %v121
    %v123 = vextract.high.u32 %v121
    %v124 = vmul.u32.u64.compose %v120, %v115
    %v125 = vextract.low.u32 %v124
    %v126 = vextract.high.u32 %v124
    %v127 = vmul.u32 %v120, %v111
    %v128 = vadd.s32 %v123, %v125
    %vm129 = vc.u32 %v123, %v125
    %v130 = vadd.s32 %v126, 1
    %v131 = vsel %vm129, %v130, %v126
    %v132 = vadd.s32 %v127, %v131
    %v133 = vadd.s32 %v132, 536870912
    %v134 = vshrl.u32 %v133, 30
    %v135 = vshll.u32 %v134, 30
    %v136 = vsub.s32 %v132, %v135
    %vm137 = vcmp.lt.s32.totalorder %v136, 0
    %v138 = vsub.s32 0, %v136
    %v139 = vsel %vm137, %v138, %v136
    %v140 = vclz %v139
    %v141 = vsub.s32 %v140, 2
    %vm142 = vcmp.gt.s32.totalorder 0, %v141
    %v143 = vsel %vm142, 0, %v141
    %v144 = vsub.s32 32, %v143
    %v145 = vshll.u32 %v136, %v143
    %v146 = vshrl.u32 %v128, %v144
    %v147 = vor.u32 %v145, %v146
    %v148 = vsub.s32 4294967266, %v143
    %v149 = vadd.s32 %v148, 127
    %v150 = vshll.u32 %v149, 23
    %v151 = vor.u32 4788187, %v150
    %v152 = vand.u32 2147483647, %v151
    %v154 = vcvt.s32.f32 %v147
    %v155 = vmul.f32 %v154, %v152
    %v156 = vxor.u32 %v155, 2147483648
    %v157 = vsel %vm74, %v156, %v155
    %v158 = vsub.s32 4, %v134
    %v159 = vsel %vm74, %v158, %v134
    %v160 = vsel %vm73, %v71, %v157
    %v161 = vsel %vm73, 0, %v159
    %v162 = vcosq.f32.pop %v160
    %v163 = vsinq.f32.pop %v160
    %vm164 = vweird.f32 %v71
    %v165 = vadd.s32 %v161, 3
    %v166 = vand.u32 %v165, 3
    %vm167 = vcmp.lt.s32.totalorder %v166, 2
    %vm168 = vcmp.eq.s32.totalorder %v166, 0
    %v169 = vxor.u32 %v163, 2147483648
    %v170 = vsel %vm168, %v162, %v169
    %vm171 = vcmp.eq.s32.totalorder %v166, 2
    %v172 = vxor.u32 %v162, 2147483648
    %v173 = vsel %vm171, %v172, %v163
    %v174 = vsel %vm167, %v170, %v173
    %v175 = vsel %vm164, nan, %v174
    %v176 = vpack.c.bf16 %v175, %v175
    %v177 = vld [vmem:[#allocation2] sm:$0xf]
    %v178 = vld [vmem:[#allocation2 + $0x4] sm:$0xf]
    %v179 = vld [vmem:[#allocation2 + $0x8] sm:$0xf]
    %v180 = vld [vmem:[#allocation2 + $0xc] sm:$0xf]
    %v181 = vld [vmem:[#allocation2 + $0x10] sm:$0xf]
    %v182 = vld [vmem:[#allocation2 + $0x14] sm:$0xf]
    %v183 = vld [vmem:[#allocation2 + $0x18] sm:$0xf]
    %v184 = vld [vmem:[#allocation2 + $0x1c] sm:$0xf]
    %v185 = vld [vmem:[#allocation2 + $0x20] sm:$0xf]
    %v186 = vld [vmem:[#allocation2 + $0x24] sm:$0xf]
    %v187 = vld [vmem:[#allocation2 + $0x28] sm:$0xf]
    %v188 = vld [vmem:[#allocation2 + $0x2c] sm:$0xf]
    %v189 = vld [vmem:[#allocation2 + $0x30] sm:$0xf]
    %v190 = vld [vmem:[#allocation2 + $0x34] sm:$0xf]
    %v191 = vld [vmem:[#allocation2 + $0x38] sm:$0xf]
    %v192 = vld [vmem:[#allocation2 + $0x3c] sm:$0xf]
    %v193 = vlaneseq
    %v194 = vshrl.u32 %v193, 7
    %v195 = vsub.s32 0, %v194
    %v196 = vrot.slane %v52, %v195
    %v213 = vunpack.c.l.b16 %v177
    %v214 = vunpack.c.l.b16 %v178
    %v215 = vunpack.c.l.b16 %v179
    %v216 = vunpack.c.l.b16 %v180
    %v217 = vunpack.c.l.b16 %v181
    %v218 = vunpack.c.l.b16 %v182
    %v219 = vunpack.c.l.b16 %v183
    %v220 = vunpack.c.l.b16 %v184
    %v221 = vunpack.c.l.b16 %v185
    %v222 = vunpack.c.l.b16 %v186
    %v223 = vunpack.c.l.b16 %v187
    %v224 = vunpack.c.l.b16 %v188
    %v225 = vunpack.c.l.b16 %v189
    %v226 = vunpack.c.l.b16 %v190
    %v227 = vunpack.c.l.b16 %v191
    %v228 = vunpack.c.l.b16 %v192
    %v229 = vpack.c.b16 %v214, %v213
    %v230 = vpack.c.b16 %v216, %v215
    %v231 = vpack.c.b16 %v218, %v217
    %v232 = vpack.c.b16 %v220, %v219
    %v233 = vpack.c.b16 %v222, %v221
    %v234 = vpack.c.b16 %v224, %v223
    %v235 = vpack.c.b16 %v226, %v225
    %v236 = vpack.c.b16 %v228, %v227
    %245 = vmatprep.subr.bf16.mxu0 0
    %246 = vmatpush1.bf16.msra.mxu0 %v229
    %247 = vmatprep.subr.bf16.mxu0 0
    %248 = vmatpush1.bf16.msra.mxu0 %v230
    %249 = vmatprep.subr.bf16.mxu0 0
    %250 = vmatpush1.bf16.msra.mxu0 %v231
    %251 = vmatprep.subr.bf16.mxu0 0
    %252 = vmatpush1.bf16.msra.mxu0 %v232
    %253 = vmatprep.subr.bf16.mxu0 0
    %254 = vmatpush1.bf16.msra.mxu0 %v233
    %255 = vmatprep.subr.bf16.mxu0 0
    %256 = vmatpush1.bf16.msra.mxu0 %v234
    %257 = vmatprep.subr.bf16.mxu0 0
    %258 = vmatpush1.bf16.msra.mxu0 %v235
    %259 = vmatprep.subr.bf16.mxu0 0
    %260 = vmatpush1.bf16.msra.mxu0 %v236
    %261 = vmatprep.subr.bf16.mxu0 0
    %262 = vmatpush1.bf16.msra.mxu0 0
    %263 = vmatprep.subr.bf16.mxu0 0
    %264 = vmatpush1.bf16.msra.mxu0 0
    %265 = vmatprep.subr.bf16.mxu0 0
    %266 = vmatpush1.bf16.msra.mxu0 0
    %267 = vmatprep.subr.bf16.mxu0 0
    %268 = vmatpush1.bf16.msra.mxu0 0
    %269 = vmatprep.subr.bf16.mxu0 0
    %270 = vmatpush1.bf16.msra.mxu0 0
    %271 = vmatprep.subr.bf16.mxu0 0
    %272 = vmatpush1.bf16.msra.mxu0 0
    %273 = vmatprep.subr.bf16.mxu0 0
    %274 = vmatpush1.bf16.msra.mxu0 0
    %275 = vmatprep.subr.bf16.mxu0 0
    %276 = vmatpush1.bf16.msra.mxu0 0
    %277 = vmatprep.mubr.bf16.mxu0 0
    %278 = vmatmul.mubr.bf16.gmra.mrb[0].mxu0 %v176
    %v279 = vpop.f32.mrb[0].mxu0
    %v280 = vadd.f32 %v196, %v279
    %v281 = vpop.f32.mrb[0].mxu0
    %v282 = vpop.f32.mrb[0].mxu0
    %v283 = vpop.f32.mrb[0].mxu0
    %284 = vdwg.mxu0
    %v285 = vmul.f32 %v280, 0.5
    %v286 = vmul.f32 %v280, 0.70710677
    %v287 = vand.u32 2147483647, %v286
    %v288 = vmul.f32 %v287, 0.47047
    %v289 = vadd.f32 %v288, 1.0
    %v290 = vrcp.pop %v289
    %v291 = vmul.f32 %v289, %v290
    %v292 = vsub.f32 2.0, %v291
    %v293 = vmul.f32 %v290, %v292
    %v294 = vmul.f32 %v293, 0.7478556
    %v295 = vadd.f32 %v294, -0.0958798
    %v296 = vmul.f32 %v295, %v293
    %v297 = vadd.f32 %v296, 0.3480242
    %v298 = vmul.f32 %v297, %v293
    %v299 = vsub.f32 0.0, %v287
    %v300 = vmul.f32 %v299, %v287
    %v301 = vmul.f32 %v300, 1.442695
    %v302 = vpow.pop %v301
    %v303 = vmul.f32 %v298, %v302
    %v304 = vsub.f32 1.0, %v303
    %vm305 = vcmp.lt.f32.partialorder %v286, 0.0
    %v306 = vsub.f32 0.0, %v304
    %v307 = vsel %vm305, %v306, %v304
    %v308 = vadd.f32 %v307, 1.0
    %v309 = vmul.f32 %v285, %v308
    %v310 = vpack.c.bf16 %v309, %v309
    %s311 = scalar_lea.vmem [#allocation2], 64
    %v312 = vld [vmem:[%s311] sm:$0xf]
    %v313 = vld [vmem:[%s311 + $0x4] sm:$0xf]
    %v314 = vld [vmem:[%s311 + $0x8] sm:$0xf]
    %v315 = vld [vmem:[%s311 + $0xc] sm:$0xf]
    %v316 = vld [vmem:[%s311 + $0x10] sm:$0xf]
    %v317 = vld [vmem:[%s311 + $0x14] sm:$0xf]
    %v318 = vld [vmem:[%s311 + $0x18] sm:$0xf]
    %v319 = vld [vmem:[%s311 + $0x1c] sm:$0xf]
    %v320 = vld [vmem:[%s311 + $0x20] sm:$0xf]
    %v321 = vld [vmem:[%s311 + $0x24] sm:$0xf]
    %v322 = vld [vmem:[%s311 + $0x28] sm:$0xf]
    %v323 = vld [vmem:[%s311 + $0x2c] sm:$0xf]
    %v324 = vld [vmem:[%s311 + $0x30] sm:$0xf]
    %v325 = vld [vmem:[%s311 + $0x34] sm:$0xf]
    %v326 = vld [vmem:[%s311 + $0x38] sm:$0xf]
    %v327 = vld [vmem:[%s311 + $0x3c] sm:$0xf]
    %v328 = vld [vmem:[%s1] sm:$0xff]
    %v329 = vpack.c.bf16 %v328, %v328
    %v330 = vld [vmem:[#allocation5] sm:$0xf]
    %v331 = vld [vmem:[#allocation5 + $0x4] sm:$0xf]
    %v332 = vld [vmem:[#allocation5 + $0x8] sm:$0xf]
    %v333 = vld [vmem:[#allocation5 + $0xc] sm:$0xf]
    %v334 = vld [vmem:[#allocation5 + $0x10] sm:$0xf]
    %v335 = vld [vmem:[#allocation5 + $0x14] sm:$0xf]
    %v336 = vld [vmem:[#allocation5 + $0x18] sm:$0xf]
    %v337 = vld [vmem:[#allocation5 + $0x1c] sm:$0xf]
    %v346 = vunpack.c.l.b16 %v330
    %v347 = vunpack.c.l.b16 %v331
    %v348 = vunpack.c.l.b16 %v332
    %v349 = vunpack.c.l.b16 %v333
    %v350 = vunpack.c.l.b16 %v334
    %v351 = vunpack.c.l.b16 %v335
    %v352 = vunpack.c.l.b16 %v336
    %v353 = vunpack.c.l.b16 %v337
    %v354 = vpack.c.b16 %v347, %v346
    %v355 = vpack.c.b16 %v349, %v348
    %v356 = vpack.c.b16 %v351, %v350
    %v357 = vpack.c.b16 %v353, %v352
    %vm362 = vcmask 523264
    %v364 = vsel %vm362, %v329, 0
    %366 = vmatprep.subr.bf16.mxu0 0
    %367 = vmatpush1.bf16.msra.mxu0 %v354
    %368 = vmatprep.subr.bf16.mxu0 0
    %369 = vmatpush1.bf16.msra.mxu0 %v355
    %370 = vmatprep.subr.bf16.mxu0 0
    %371 = vmatpush1.bf16.msra.mxu0 %v356
    %372 = vmatprep.subr.bf16.mxu0 0
    %373 = vmatpush1.bf16.msra.mxu0 %v357
    %374 = vmatprep.subr.bf16.mxu0 0
    %375 = vmatpush1.bf16.msra.mxu0 0
    %376 = vmatprep.subr.bf16.mxu0 0
    %377 = vmatpush1.bf16.msra.mxu0 0
    %378 = vmatprep.subr.bf16.mxu0 0
    %379 = vmatpush1.bf16.msra.mxu0 0
    %380 = vmatprep.subr.bf16.mxu0 0
    %381 = vmatpush1.bf16.msra.mxu0 0
    %382 = vmatprep.subr.bf16.mxu0 0
    %383 = vmatpush1.bf16.msra.mxu0 0
    %384 = vmatprep.subr.bf16.mxu0 0
    %385 = vmatpush1.bf16.msra.mxu0 0
    %386 = vmatprep.subr.bf16.mxu0 0
    %387 = vmatpush1.bf16.msra.mxu0 0
    %388 = vmatprep.subr.bf16.mxu0 0
    %389 = vmatpush1.bf16.msra.mxu0 0
    %390 = vmatprep.subr.bf16.mxu0 0
    %391 = vmatpush1.bf16.msra.mxu0 0
    %392 = vmatprep.subr.bf16.mxu0 0
    %393 = vmatpush1.bf16.msra.mxu0 0
    %394 = vmatprep.subr.bf16.mxu0 0
    %395 = vmatpush1.bf16.msra.mxu0 0
    %396 = vmatprep.subr.bf16.mxu0 0
    %397 = vmatpush1.bf16.msra.mxu0 0
    %398 = vmatprep.mubr.bf16.mxu0 0
    %399 = vmatmul.mubr.bf16.gmra.mrb[0].mxu0 %v364
    %v400 = vpop.f32.mrb[0].mxu0
    %v401 = vadd.f32 0.0, %v400
    %v402 = vpop.f32.mrb[0].mxu0
    %v403 = vpop.f32.mrb[0].mxu0
    %v404 = vpop.f32.mrb[0].mxu0
    %405 = vdwg.mxu0
    %v422 = vunpack.c.l.b16 %v312
    %v423 = vunpack.c.l.b16 %v313
    %v424 = vunpack.c.l.b16 %v314
    %v425 = vunpack.c.l.b16 %v315
    %v426 = vunpack.c.l.b16 %v316
    %v427 = vunpack.c.l.b16 %v317
    %v428 = vunpack.c.l.b16 %v318
    %v429 = vunpack.c.l.b16 %v319
    %v430 = vunpack.c.l.b16 %v320
    %v431 = vunpack.c.l.b16 %v321
    %v432 = vunpack.c.l.b16 %v322
    %v433 = vunpack.c.l.b16 %v323
    %v434 = vunpack.c.l.b16 %v324
    %v435 = vunpack.c.l.b16 %v325
    %v436 = vunpack.c.l.b16 %v326
    %v437 = vunpack.c.l.b16 %v327
    %v438 = vpack.c.b16 %v423, %v422
    %v439 = vpack.c.b16 %v425, %v424
    %v440 = vpack.c.b16 %v427, %v426
    %v441 = vpack.c.b16 %v429, %v428
    %v442 = vpack.c.b16 %v431, %v430
    %v443 = vpack.c.b16 %v433, %v432
    %v444 = vpack.c.b16 %v435, %v434
    %v445 = vpack.c.b16 %v437, %v436
    %454 = vmatprep.subr.bf16.mxu0 0
    %455 = vmatpush1.bf16.msra.mxu0 %v438
    %456 = vmatprep.subr.bf16.mxu0 0
    %457 = vmatpush1.bf16.msra.mxu0 %v439
    %458 = vmatprep.subr.bf16.mxu0 0
    %459 = vmatpush1.bf16.msra.mxu0 %v440
    %460 = vmatprep.subr.bf16.mxu0 0
    %461 = vmatpush1.bf16.msra.mxu0 %v441
    %462 = vmatprep.subr.bf16.mxu0 0
    %463 = vmatpush1.bf16.msra.mxu0 %v442
    %464 = vmatprep.subr.bf16.mxu0 0
    %465 = vmatpush1.bf16.msra.mxu0 %v443
    %466 = vmatprep.subr.bf16.mxu0 0
    %467 = vmatpush1.bf16.msra.mxu0 %v444
    %468 = vmatprep.subr.bf16.mxu0 0
    %469 = vmatpush1.bf16.msra.mxu0 %v445
    %470 = vmatprep.subr.bf16.mxu0 0
    %471 = vmatpush1.bf16.msra.mxu0 0
    %472 = vmatprep.subr.bf16.mxu0 0
    %473 = vmatpush1.bf16.msra.mxu0 0
    %474 = vmatprep.subr.bf16.mxu0 0
    %475 = vmatpush1.bf16.msra.mxu0 0
    %476 = vmatprep.subr.bf16.mxu0 0
    %477 = vmatpush1.bf16.msra.mxu0 0
    %478 = vmatprep.subr.bf16.mxu0 0
    %479 = vmatpush1.bf16.msra.mxu0 0
    %480 = vmatprep.subr.bf16.mxu0 0
    %481 = vmatpush1.bf16.msra.mxu0 0
    %482 = vmatprep.subr.bf16.mxu0 0
    %483 = vmatpush1.bf16.msra.mxu0 0
    %484 = vmatprep.subr.bf16.mxu0 0
    %485 = vmatpush1.bf16.msra.mxu0 0
    %486 = vmatprep.mubr.bf16.mxu0 0
    %487 = vmatmul.mubr.bf16.gmra.mrb[0].mxu0 %v310
    %v488 = vpop.f32.mrb[0].mxu0
    %v489 = vadd.f32 %v401, %v488
    %v490 = vpop.f32.mrb[0].mxu0
    %v491 = vpop.f32.mrb[0].mxu0
    %v492 = vpop.f32.mrb[0].mxu0
    %493 = vdwg.mxu0
    %v494 = vlaneseq
    %v495 = vshrl.u32 %v494, 7
    %v496 = vsub.s32 0, %v495
    %v497 = vrot.slane %v53, %v496
    %v498 = vadd.f32 %v489, %v497
    %v499 = vmul.f32 %v498, 0.5
    %v500 = vmul.f32 %v498, 0.70710677
    %v501 = vand.u32 2147483647, %v500
    %v502 = vmul.f32 %v501, 0.47047
    %v503 = vadd.f32 %v502, 1.0
    %v504 = vrcp.pop %v503
    %v505 = vmul.f32 %v503, %v504
    %v506 = vsub.f32 2.0, %v505
    %v507 = vmul.f32 %v504, %v506
    %v508 = vmul.f32 %v507, 0.7478556
    %v509 = vadd.f32 %v508, -0.0958798
    %v510 = vmul.f32 %v509, %v507
    %v511 = vadd.f32 %v510, 0.3480242
    %v512 = vmul.f32 %v511, %v507
    %v513 = vsub.f32 0.0, %v501
    %v514 = vmul.f32 %v513, %v501
    %v515 = vmul.f32 %v514, 1.442695
    %v516 = vpow.pop %v515
    %v517 = vmul.f32 %v512, %v516
    %v518 = vsub.f32 1.0, %v517
    %vm519 = vcmp.lt.f32.partialorder %v500, 0.0
    %v520 = vsub.f32 0.0, %v518
    %v521 = vsel %vm519, %v520, %v518
    %v522 = vadd.f32 %v521, 1.0
    %v523 = vmul.f32 %v499, %v522
    %v524 = vpack.c.bf16 %v523, %v523
    %s525 = scalar_lea.vmem [#allocation2], 128
    %v526 = vld [vmem:[%s525] sm:$0xf]
    %v527 = vld [vmem:[%s525 + $0x4] sm:$0xf]
    %v528 = vld [vmem:[%s525 + $0x8] sm:$0xf]
    %v529 = vld [vmem:[%s525 + $0xc] sm:$0xf]
    %v530 = vld [vmem:[%s525 + $0x10] sm:$0xf]
    %v531 = vld [vmem:[%s525 + $0x14] sm:$0xf]
    %v532 = vld [vmem:[%s525 + $0x18] sm:$0xf]
    %v533 = vld [vmem:[%s525 + $0x1c] sm:$0xf]
    %v534 = vld [vmem:[%s525 + $0x20] sm:$0xf]
    %v535 = vld [vmem:[%s525 + $0x24] sm:$0xf]
    %v536 = vld [vmem:[%s525 + $0x28] sm:$0xf]
    %v537 = vld [vmem:[%s525 + $0x2c] sm:$0xf]
    %v538 = vld [vmem:[%s525 + $0x30] sm:$0xf]
    %v539 = vld [vmem:[%s525 + $0x34] sm:$0xf]
    %v540 = vld [vmem:[%s525 + $0x38] sm:$0xf]
    %v541 = vld [vmem:[%s525 + $0x3c] sm:$0xf]
    %v542 = vlaneseq
    %v543 = vshrl.u32 %v542, 7
    %v544 = vsub.s32 0, %v543
    %v545 = vrot.slane %v54, %v544
    %v562 = vunpack.c.l.b16 %v526
    %v563 = vunpack.c.l.b16 %v527
    %v564 = vunpack.c.l.b16 %v528
    %v565 = vunpack.c.l.b16 %v529
    %v566 = vunpack.c.l.b16 %v530
    %v567 = vunpack.c.l.b16 %v531
    %v568 = vunpack.c.l.b16 %v532
    %v569 = vunpack.c.l.b16 %v533
    %v570 = vunpack.c.l.b16 %v534
    %v571 = vunpack.c.l.b16 %v535
    %v572 = vunpack.c.l.b16 %v536
    %v573 = vunpack.c.l.b16 %v537
    %v574 = vunpack.c.l.b16 %v538
    %v575 = vunpack.c.l.b16 %v539
    %v576 = vunpack.c.l.b16 %v540
    %v577 = vunpack.c.l.b16 %v541
    %v578 = vpack.c.b16 %v563, %v562
    %v579 = vpack.c.b16 %v565, %v564
    %v580 = vpack.c.b16 %v567, %v566
    %v581 = vpack.c.b16 %v569, %v568
    %v582 = vpack.c.b16 %v571, %v570
    %v583 = vpack.c.b16 %v573, %v572
    %v584 = vpack.c.b16 %v575, %v574
    %v585 = vpack.c.b16 %v577, %v576
    %594 = vmatprep.subr.bf16.mxu0 0
    %595 = vmatpush1.bf16.msra.mxu0 %v578
    %596 = vmatprep.subr.bf16.mxu0 0
    %597 = vmatpush1.bf16.msra.mxu0 %v579
    %598 = vmatprep.subr.bf16.mxu0 0
    %599 = vmatpush1.bf16.msra.mxu0 %v580
    %600 = vmatprep.subr.bf16.mxu0 0
    %601 = vmatpush1.bf16.msra.mxu0 %v581
    %602 = vmatprep.subr.bf16.mxu0 0
    %603 = vmatpush1.bf16.msra.mxu0 %v582
    %604 = vmatprep.subr.bf16.mxu0 0
    %605 = vmatpush1.bf16.msra.mxu0 %v583
    %606 = vmatprep.subr.bf16.mxu0 0
    %607 = vmatpush1.bf16.msra.mxu0 %v584
    %608 = vmatprep.subr.bf16.mxu0 0
    %609 = vmatpush1.bf16.msra.mxu0 %v585
    %610 = vmatprep.subr.bf16.mxu0 0
    %611 = vmatpush1.bf16.msra.mxu0 0
    %612 = vmatprep.subr.bf16.mxu0 0
    %613 = vmatpush1.bf16.msra.mxu0 0
    %614 = vmatprep.subr.bf16.mxu0 0
    %615 = vmatpush1.bf16.msra.mxu0 0
    %616 = vmatprep.subr.bf16.mxu0 0
    %617 = vmatpush1.bf16.msra.mxu0 0
    %618 = vmatprep.subr.bf16.mxu0 0
    %619 = vmatpush1.bf16.msra.mxu0 0
    %620 = vmatprep.subr.bf16.mxu0 0
    %621 = vmatpush1.bf16.msra.mxu0 0
    %622 = vmatprep.subr.bf16.mxu0 0
    %623 = vmatpush1.bf16.msra.mxu0 0
    %624 = vmatprep.subr.bf16.mxu0 0
    %625 = vmatpush1.bf16.msra.mxu0 0
    %626 = vmatprep.mubr.bf16.mxu0 0
    %627 = vmatmul.mubr.bf16.gmra.mrb[0].mxu0 %v524
    %v628 = vpop.f32.mrb[0].mxu0
    %v629 = vadd.f32 %v545, %v628
    %v630 = vpop.f32.mrb[0].mxu0
    %v631 = vpop.f32.mrb[0].mxu0
    %v632 = vpop.f32.mrb[0].mxu0
    %633 = vdwg.mxu0
    %v634 = vmul.f32 %v629, 0.5
    %v635 = vmul.f32 %v629, 0.70710677
    %v636 = vand.u32 2147483647, %v635
    %v637 = vmul.f32 %v636, 0.47047
    %v638 = vadd.f32 %v637, 1.0
    %v639 = vrcp.pop %v638
    %v640 = vmul.f32 %v638, %v639
    %v641 = vsub.f32 2.0, %v640
    %v642 = vmul.f32 %v639, %v641
    %v643 = vmul.f32 %v642, 0.7478556
    %v644 = vadd.f32 %v643, -0.0958798
    %v645 = vmul.f32 %v644, %v642
    %v646 = vadd.f32 %v645, 0.3480242
    %v647 = vmul.f32 %v646, %v642
    %v648 = vsub.f32 0.0, %v636
    %v649 = vmul.f32 %v648, %v636
    %v650 = vmul.f32 %v649, 1.442695
    %v651 = vpow.pop %v650
    %v652 = vmul.f32 %v647, %v651
    %v653 = vsub.f32 1.0, %v652
    %vm654 = vcmp.lt.f32.partialorder %v635, 0.0
    %v655 = vsub.f32 0.0, %v653
    %v656 = vsel %vm654, %v655, %v653
    %v657 = vadd.f32 %v656, 1.0
    %v658 = vmul.f32 %v634, %v657
    %v659 = vpack.c.bf16 %v658, %v658
    %s660 = scalar_lea.vmem [#allocation2], 192
    %v661 = vld [vmem:[%s660] sm:$0xf]
    %v662 = vld [vmem:[%s660 + $0x4] sm:$0xf]
    %v663 = vld [vmem:[%s660 + $0x8] sm:$0xf]
    %v664 = vld [vmem:[%s660 + $0xc] sm:$0xf]
    %v665 = vld [vmem:[%s660 + $0x10] sm:$0xf]
    %v666 = vld [vmem:[%s660 + $0x14] sm:$0xf]
    %v667 = vld [vmem:[%s660 + $0x18] sm:$0xf]
    %v668 = vld [vmem:[%s660 + $0x1c] sm:$0xf]
    %v669 = vld [vmem:[%s660 + $0x20] sm:$0xf]
    %v670 = vld [vmem:[%s660 + $0x24] sm:$0xf]
    %v671 = vld [vmem:[%s660 + $0x28] sm:$0xf]
    %v672 = vld [vmem:[%s660 + $0x2c] sm:$0xf]
    %v673 = vld [vmem:[%s660 + $0x30] sm:$0xf]
    %v674 = vld [vmem:[%s660 + $0x34] sm:$0xf]
    %v675 = vld [vmem:[%s660 + $0x38] sm:$0xf]
    %v676 = vld [vmem:[%s660 + $0x3c] sm:$0xf]
    %v677 = vlaneseq
    %v678 = vshrl.u32 %v677, 7
    %v679 = vsub.s32 0, %v678
    %v680 = vrot.slane %v55, %v679
    %v697 = vunpack.c.l.b16 %v661
    %v698 = vunpack.c.l.b16 %v662
    %v699 = vunpack.c.l.b16 %v663
    %v700 = vunpack.c.l.b16 %v664
    %v701 = vunpack.c.l.b16 %v665
    %v702 = vunpack.c.l.b16 %v666
    %v703 = vunpack.c.l.b16 %v667
    %v704 = vunpack.c.l.b16 %v668
    %v705 = vunpack.c.l.b16 %v669
    %v706 = vunpack.c.l.b16 %v670
    %v707 = vunpack.c.l.b16 %v671
    %v708 = vunpack.c.l.b16 %v672
    %v709 = vunpack.c.l.b16 %v673
    %v710 = vunpack.c.l.b16 %v674
    %v711 = vunpack.c.l.b16 %v675
    %v712 = vunpack.c.l.b16 %v676
    %v713 = vpack.c.b16 %v698, %v697
    %v714 = vpack.c.b16 %v700, %v699
    %v715 = vpack.c.b16 %v702, %v701
    %v716 = vpack.c.b16 %v704, %v703
    %v717 = vpack.c.b16 %v706, %v705
    %v718 = vpack.c.b16 %v708, %v707
    %v719 = vpack.c.b16 %v710, %v709
    %v720 = vpack.c.b16 %v712, %v711
    %729 = vmatprep.subr.bf16.mxu0 0
    %730 = vmatpush1.bf16.msra.mxu0 %v713
    %731 = vmatprep.subr.bf16.mxu0 0
    %732 = vmatpush1.bf16.msra.mxu0 %v714
    %733 = vmatprep.subr.bf16.mxu0 0
    %734 = vmatpush1.bf16.msra.mxu0 %v715
    %735 = vmatprep.subr.bf16.mxu0 0
    %736 = vmatpush1.bf16.msra.mxu0 %v716
    %737 = vmatprep.subr.bf16.mxu0 0
    %738 = vmatpush1.bf16.msra.mxu0 %v717
    %739 = vmatprep.subr.bf16.mxu0 0
    %740 = vmatpush1.bf16.msra.mxu0 %v718
    %741 = vmatprep.subr.bf16.mxu0 0
    %742 = vmatpush1.bf16.msra.mxu0 %v719
    %743 = vmatprep.subr.bf16.mxu0 0
    %744 = vmatpush1.bf16.msra.mxu0 %v720
    %745 = vmatprep.subr.bf16.mxu0 0
    %746 = vmatpush1.bf16.msra.mxu0 0
    %747 = vmatprep.subr.bf16.mxu0 0
    %748 = vmatpush1.bf16.msra.mxu0 0
    %749 = vmatprep.subr.bf16.mxu0 0
    %750 = vmatpush1.bf16.msra.mxu0 0
    %751 = vmatprep.subr.bf16.mxu0 0
    %752 = vmatpush1.bf16.msra.mxu0 0
    %753 = vmatprep.subr.bf16.mxu0 0
    %754 = vmatpush1.bf16.msra.mxu0 0
    %755 = vmatprep.subr.bf16.mxu0 0
    %756 = vmatpush1.bf16.msra.mxu0 0
    %757 = vmatprep.subr.bf16.mxu0 0
    %758 = vmatpush1.bf16.msra.mxu0 0
    %759 = vmatprep.subr.bf16.mxu0 0
    %760 = vmatpush1.bf16.msra.mxu0 0
    %761 = vmatprep.mubr.bf16.mxu0 0
    %762 = vmatmul.mubr.bf16.gmra.mrb[0].mxu0 %v659
    %v763 = vpop.f32.mrb[0].mxu0
    %v764 = vadd.f32 %v680, %v763
    %v765 = vpop.f32.mrb[0].mxu0
    %v766 = vpop.f32.mrb[0].mxu0
    %v767 = vpop.f32.mrb[0].mxu0
    %768 = vdwg.mxu0
    %769 = vst [vmem:[#allocation7] sm:$0xff] %v764
    // Predicated region
    $region30: #{tpu_custom_call.1} parent=1 // pred_check
      _
    $region31: #{tpu_custom_call.1} parent=1 // pred_check_branch
      %771 = sbr.rel (0) target = $region33
    $region32: #{tpu_custom_call.1} parent=1 // pred_region
      %s773 = ssub.s32 128, 128
      %774 = vsyncadd [#allocation4], %s773
      %s776 = sshll.u32 [#allocation7], 4
      %s777 = int_to_ptr.vmem [resolvable:$true] %s776
      %779 = dma.vmem_to_hbm [thread:$0]  %s777, 128, %s5, [#allocation4]
    $region33: #{tpu_custom_call.1} parent=1 // pred_fallthru
      _
    // Predicated region
    $region34: #{tpu_custom_call.1} parent=1 // pred_check
      _
    $region35: #{tpu_custom_call.1} parent=1 // pred_check_branch
      %781 = sbr.rel (0) target = $region37
    $region36: #{tpu_custom_call.1} parent=1 // pred_region
      %782 = dma.done [#allocation4], 128
    $region37: #{tpu_custom_call.1} parent=1 // pred_fallthru
      _
    %783 = vsyncpa [#allocation3], 1
    %784 = vsyncpa [#allocation6], 1
    %785 = vsyncpa [#allocation4], 1

</llo_original>
